<compile_context>
chip_gen: v6e
topology: v6e:2x2x1
jax: 0.10.0
libtpu: 0.0.40
codegen_flags: <defaults>
</compile_context>

<pallas_src>
import jax
import jax.numpy as jnp
from jax.experimental import pallas as pl
from jax.experimental.pallas import tpu as pltpu


def _round_up(n, m):
    return ((n + m - 1) // m) * m


def qnet_kernel(x_ref, w1_ref, b1_ref, w2_ref, b2_ref, w3_ref, b3_ref, o_ref):
    """One batch tile of the fused 3-layer MLP. h1/h2 never leave VMEM/vregs."""
    md = w1_ref.dtype
    x = x_ref[...].astype(md)  # (TB, n_state): f32 from HBM, cast to bf16 in-kernel (VPU)

    # Layer 1: Linear(n_state -> hidden) + ReLU   (MXU bf16, f32 accumulate)
    h1 = jnp.dot(x, w1_ref[...], preferred_element_type=jnp.float32) + b1_ref[...]
    h1 = jnp.maximum(h1, 0.0)  # f32 elementwise (VPU)

    # Layer 2: Linear(hidden -> hidden) + ReLU
    h2 = jnp.dot(h1.astype(md), w2_ref[...], preferred_element_type=jnp.float32) + b2_ref[...]
    h2 = jnp.maximum(h2, 0.0)

    # Layer 3: Linear(hidden -> n_action)  -- narrow (TB, n_action) output, tiny HBM stream
    out = jnp.dot(h2.astype(md), w3_ref[...], preferred_element_type=jnp.float32) + b3_ref[...]
    o_ref[...] = out.astype(o_ref.dtype)


def qnet_forward(x, params):
    """Qnet forward pass as a single fused Pallas kernel.

    x: (B, n_state) float32
    params: dict from init_qnet_params (hidden-axis padded, pre-transposed weights).
    Returns: (B, n_action) float32.
    """
    B, n_state = x.shape
    n_action = params["n_action"]
    hidden = params["hidden"]
    H_pad = params["w1"].shape[1]

    # --- batch tiling ------------------------------------------------------
    # Large tiles amortize the ~0.35 us/step grid overhead; balanced tiles avoid dead rows on the
    # last step; >= 2 tiles at training batch sizes keeps both v7x TensorCores busy.
    TB_MAX = 2048
    min_tiles = 2 if B >= 512 else 1
    num_tiles = max(min_tiles, pl.cdiv(B, TB_MAX))
    TB = _round_up(pl.cdiv(B, num_tiles), 16)
    num_tiles = pl.cdiv(B, TB)
    B_pad = num_tiles * TB

    # Row-pad only (no feature pad, no dtype cast) — usually a no-op at training batch sizes.
    x_p = x if B_pad == B else jnp.pad(x, ((0, B_pad - B), (0, 0)))

    # Cost estimate from true (unpadded) dims.
    flops = 2 * B * (n_state * hidden + hidden * hidden + hidden * n_action)
    param_bytes = sum(int(params[k].nbytes) for k in ("w1", "b1", "w2", "b2", "w3", "b3"))
    bytes_accessed = int(x_p.nbytes) + param_bytes + B_pad * n_action * 4

    out_pad = pl.pallas_call(
        qnet_kernel,
        out_shape=jax.ShapeDtypeStruct((B_pad, n_action), jnp.float32),
        grid=(num_tiles,),
        in_specs=[
            pl.BlockSpec((TB, n_state), lambda i: (i, 0)),       # activation tile (pipelined)
            pl.BlockSpec((n_state, H_pad), lambda i: (0, 0)),    # weights: VMEM-resident
            pl.BlockSpec((1, H_pad), lambda i: (0, 0)),
            pl.BlockSpec((H_pad, H_pad), lambda i: (0, 0)),
            pl.BlockSpec((1, H_pad), lambda i: (0, 0)),
            pl.BlockSpec((H_pad, n_action), lambda i: (0, 0)),
            pl.BlockSpec((1, n_action), lambda i: (0, 0)),
        ],
        out_specs=pl.BlockSpec((TB, n_action), lambda i: (i, 0)),  # narrow output (full last dim)
        compiler_params=pltpu.CompilerParams(
            dimension_semantics=("parallel",),  # shard batch tiles across v7x's 2 TCs
        ),
        cost_estimate=pl.CostEstimate(
            flops=flops, transcendentals=0, bytes_accessed=bytes_accessed
        ),
    )(x_p, params["w1"], params["b1"], params["w2"], params["b2"],
      params["w3"], params["b3"])

    return out_pad if B_pad == B else out_pad[:B]


def init_qnet_params(key, n_state, n_action, hidden, *, matmul_dtype=jnp.bfloat16):
    """PyTorch-Linear-style init (U[-1/sqrt(fan_in), 1/sqrt(fan_in)]), zero-padded once along the
    hidden axis only. Returns (kernel params, unpadded f32 params for a pure-f32 reference)."""
    ks = jax.random.split(key, 6)

    def linear(kw, kb, fan_in, fan_out):
        bound = 1.0 / jnp.sqrt(jnp.float32(fan_in))
        w = jax.random.uniform(kw, (fan_in, fan_out), jnp.float32, -bound, bound)
        b = jax.random.uniform(kb, (1, fan_out), jnp.float32, -bound, bound)
        return w, b

    w1, b1 = linear(ks[0], ks[1], n_state, hidden)
    w2, b2 = linear(ks[2], ks[3], hidden, hidden)
    w3, b3 = linear(ks[4], ks[5], hidden, n_action)
    ref = {"w1": w1, "b1": b1, "w2": w2, "b2": b2, "w3": w3, "b3": b3}

    H_pad = _round_up(hidden, 128)

    def pad_cols(a, cols):
        return jnp.pad(a, ((0, 0), (0, cols - a.shape[1])))

    def pad_rows(a, rows):
        return jnp.pad(a, ((0, rows - a.shape[0]), (0, 0)))

    params = {
        # matmul operands in bf16 (MXU fast path); biases stay f32 (elementwise in f32 everywhere)
        "w1": pad_cols(w1, H_pad).astype(matmul_dtype),              # (n_state, H_pad)
        "b1": pad_cols(b1, H_pad),                                   # (1, H_pad) f32
        "w2": pad_rows(pad_cols(w2, H_pad), H_pad).astype(matmul_dtype),  # (H_pad, H_pad)
        "b2": pad_cols(b2, H_pad),                                   # (1, H_pad) f32
        "w3": pad_rows(w3, H_pad).astype(matmul_dtype),              # (H_pad, n_action)
        "b3": b3,                                                    # (1, n_action) f32
        "n_state": n_state, "n_action": n_action, "hidden": hidden,
    }
    return params, ref


def qnet_reference_same_dtype(x, p):
    """JAX reference using the identical bf16 operands / f32 accumulation as the kernel."""
    md = p["w1"].dtype
    xq = x.astype(md)
    h1 = jnp.maximum(jnp.dot(xq, p["w1"], preferred_element_type=jnp.float32) + p["b1"], 0.0)
    h2 = jnp.maximum(
        jnp.dot(h1.astype(md), p["w2"], preferred_element_type=jnp.float32) + p["b2"], 0.0
    )
    return jnp.dot(h2.astype(md), p["w3"], preferred_element_type=jnp.float32) + p["b3"]


def qnet_reference_f32(x, p):
    """Pure-f32 reference on the original (unpadded) weights."""
    h1 = jnp.maximum(x @ p["w1"] + p["b1"], 0.0)
    h2 = jnp.maximum(h1 @ p["w2"] + p["b2"], 0.0)
    return h2 @ p["w3"] + p["b3"]


if __name__ == "__main__":
    # Small shapes consistent with a DQN Q-network (CartPole-like).
    n_state, n_action, hidden = 4, 2, 32

    key = jax.random.PRNGKey(0)
    k_params, k_x1, k_x2 = jax.random.split(key, 3)
    params, ref_params = init_qnet_params(k_params, n_state, n_action, hidden)

    for batch in (2, 37):  # 37 exercises the batch-row-padding path
        k_x = k_x1 if batch == 2 else k_x2
        x = jax.random.normal(k_x, (batch, n_state), jnp.float32)

        out = qnet_forward(x, params)
        out = jax.block_until_ready(out)
        assert out.shape == (batch, n_action)

        # Tight check vs a JAX reference with identical bf16 operands / f32 accumulation.
        ref_bf16 = qnet_reference_same_dtype(x, params)
        err = jnp.max(jnp.abs(out - ref_bf16)) / (jnp.max(jnp.abs(ref_bf16)) + 1e-6)
        assert err < 1e-3, f"mismatch vs same-dtype reference (rel err {err})"

        # Sanity check vs pure-f32 math on unpadded weights (bf16 operands add ~0.5-1% rel error).
        ref_f32 = qnet_reference_f32(x, ref_params)
        assert jnp.allclose(out, ref_f32, atol=5e-2, rtol=5e-2), "mismatch vs f32 reference"

    print("KERNEL_OK")
</pallas_src>

<mosaic_0001>
module attributes {stable_mosaic.version = 11 : i64} {
  func.func @qnet_kernel(%arg0: i32, %arg1: memref<16x4xf32, #tpu.memory_space<vmem>>, %arg2: memref<4x128xbf16, #tpu.memory_space<vmem>>, %arg3: memref<1x128xf32, #tpu.memory_space<vmem>>, %arg4: memref<128x128xbf16, #tpu.memory_space<vmem>>, %arg5: memref<1x128xf32, #tpu.memory_space<vmem>>, %arg6: memref<128x2xbf16, #tpu.memory_space<vmem>>, %arg7: memref<1x2xf32, #tpu.memory_space<vmem>>, %arg8: memref<16x2xf32, #tpu.memory_space<vmem>>) attributes {dimension_semantics = [#tpu.dimension_semantics<parallel>], iteration_bounds = array<i64: 1>, scalar_prefetch = 0 : i64, scratch_operands = 0 : i64, tpu.core_type = #tpu.core_type<tc>, window_params = [{transform_indices = @transform_0, window_bounds = array<i64: 16, 4>}, {pipeline_mode = #tpu.pipeline_mode<synchronous>, transform_indices = @transform_1, window_bounds = array<i64: 4, 128>}, {pipeline_mode = #tpu.pipeline_mode<synchronous>, transform_indices = @transform_2, window_bounds = array<i64: 1, 128>}, {pipeline_mode = #tpu.pipeline_mode<synchronous>, transform_indices = @transform_3, window_bounds = array<i64: 128, 128>}, {pipeline_mode = #tpu.pipeline_mode<synchronous>, transform_indices = @transform_4, window_bounds = array<i64: 1, 128>}, {pipeline_mode = #tpu.pipeline_mode<synchronous>, transform_indices = @transform_5, window_bounds = array<i64: 128, 2>}, {pipeline_mode = #tpu.pipeline_mode<synchronous>, transform_indices = @transform_6, window_bounds = array<i64: 1, 2>}, {transform_indices = @transform_7, window_bounds = array<i64: 16, 2>}]} {
    %c0 = arith.constant 0 : index
    %c0_0 = arith.constant 0 : index
    %0 = vector.load %arg1[%c0, %c0_0] : memref<16x4xf32, #tpu.memory_space<vmem>>, vector<16x4xf32>
    %1 = arith.truncf %0 : vector<16x4xf32> to vector<16x4xbf16>
    %c0_1 = arith.constant 0 : index
    %c0_2 = arith.constant 0 : index
    %2 = vector.load %arg2[%c0_1, %c0_2] : memref<4x128xbf16, #tpu.memory_space<vmem>>, vector<4x128xbf16>
    %cst = arith.constant dense<0.000000e+00> : vector<16x128xf32>
    %3 = tpu.matmul %1, %2, %cst {dimension_numbers = #tpu.dot_dimension_numbers<[1], [0], [0], [1], [0, 0, 1, 1], [], []>} : vector<16x4xbf16>, vector<4x128xbf16>, vector<16x128xf32> -> vector<16x128xf32>
    %c0_3 = arith.constant 0 : index
    %c0_4 = arith.constant 0 : index
    %4 = vector.load %arg3[%c0_3, %c0_4] : memref<1x128xf32, #tpu.memory_space<vmem>>, vector<1x128xf32>
    %5 = vector.broadcast %4 : vector<1x128xf32> to vector<16x128xf32>
    %6 = arith.addf %3, %5 : vector<16x128xf32>
    %cst_5 = arith.constant 0.000000e+00 : f32
    %7 = vector.broadcast %cst_5 : f32 to vector<16x128xf32>
    %8 = arith.maximumf %6, %7 : vector<16x128xf32>
    %9 = arith.truncf %8 : vector<16x128xf32> to vector<16x128xbf16>
    %c0_6 = arith.constant 0 : index
    %c0_7 = arith.constant 0 : index
    %10 = vector.load %arg4[%c0_6, %c0_7] : memref<128x128xbf16, #tpu.memory_space<vmem>>, vector<128x128xbf16>
    %cst_8 = arith.constant dense<0.000000e+00> : vector<16x128xf32>
    %11 = tpu.matmul %9, %10, %cst_8 {dimension_numbers = #tpu.dot_dimension_numbers<[1], [0], [0], [1], [0, 0, 1, 1], [], []>} : vector<16x128xbf16>, vector<128x128xbf16>, vector<16x128xf32> -> vector<16x128xf32>
    %c0_9 = arith.constant 0 : index
    %c0_10 = arith.constant 0 : index
    %12 = vector.load %arg5[%c0_9, %c0_10] : memref<1x128xf32, #tpu.memory_space<vmem>>, vector<1x128xf32>
    %13 = vector.broadcast %12 : vector<1x128xf32> to vector<16x128xf32>
    %14 = arith.addf %11, %13 : vector<16x128xf32>
    %cst_11 = arith.constant 0.000000e+00 : f32
    %15 = vector.broadcast %cst_11 : f32 to vector<16x128xf32>
    %16 = arith.maximumf %14, %15 : vector<16x128xf32>
    %17 = arith.truncf %16 : vector<16x128xf32> to vector<16x128xbf16>
    %c0_12 = arith.constant 0 : index
    %c0_13 = arith.constant 0 : index
    %18 = vector.load %arg6[%c0_12, %c0_13] : memref<128x2xbf16, #tpu.memory_space<vmem>>, vector<128x2xbf16>
    %cst_14 = arith.constant dense<0.000000e+00> : vector<16x2xf32>
    %19 = tpu.matmul %17, %18, %cst_14 {dimension_numbers = #tpu.dot_dimension_numbers<[1], [0], [0], [1], [0, 0, 1, 1], [], []>} : vector<16x128xbf16>, vector<128x2xbf16>, vector<16x2xf32> -> vector<16x2xf32>
    %c0_15 = arith.constant 0 : index
    %c0_16 = arith.constant 0 : index
    %20 = vector.load %arg7[%c0_15, %c0_16] : memref<1x2xf32, #tpu.memory_space<vmem>>, vector<1x2xf32>
    %21 = vector.broadcast %20 : vector<1x2xf32> to vector<16x2xf32>
    %22 = arith.addf %19, %21 : vector<16x2xf32>
    %c0_17 = arith.constant 0 : index
    %c0_18 = arith.constant 0 : index
    %23 = vector.load %arg8[%c0_17, %c0_18] : memref<16x2xf32, #tpu.memory_space<vmem>>, vector<16x2xf32>
    tpu.vector_store %arg8[%c0_17, %c0_18], %22 {strides = array<i32>} : memref<16x2xf32, #tpu.memory_space<vmem>>, vector<16x2xf32>,
    return
  }
  func.func @transform_0(%arg0: i32) -> (i32, i32) {
    %c0_i32 = arith.constant 0 : i32
    %c0_i32_0 = arith.constant 0 : i32
    return %arg0, %c0_i32 : i32, i32
  }
  func.func @transform_1(%arg0: i32) -> (i32, i32) {
    %c0_i32 = arith.constant 0 : i32
    %c0_i32_0 = arith.constant 0 : i32
    %c0_i32_1 = arith.constant 0 : i32
    return %c0_i32, %c0_i32_0 : i32, i32
  }
  func.func @transform_2(%arg0: i32) -> (i32, i32) {
    %c0_i32 = arith.constant 0 : i32
    %c0_i32_0 = arith.constant 0 : i32
    %c0_i32_1 = arith.constant 0 : i32
    return %c0_i32, %c0_i32_0 : i32, i32
  }
  func.func @transform_3(%arg0: i32) -> (i32, i32) {
    %c0_i32 = arith.constant 0 : i32
    %c0_i32_0 = arith.constant 0 : i32
    %c0_i32_1 = arith.constant 0 : i32
    return %c0_i32, %c0_i32_0 : i32, i32
  }
  func.func @transform_4(%arg0: i32) -> (i32, i32) {
    %c0_i32 = arith.constant 0 : i32
    %c0_i32_0 = arith.constant 0 : i32
    %c0_i32_1 = arith.constant 0 : i32
    return %c0_i32, %c0_i32_0 : i32, i32
  }
  func.func @transform_5(%arg0: i32) -> (i32, i32) {
    %c0_i32 = arith.constant 0 : i32
    %c0_i32_0 = arith.constant 0 : i32
    %c0_i32_1 = arith.constant 0 : i32
    return %c0_i32, %c0_i32_0 : i32, i32
  }
  func.func @transform_6(%arg0: i32) -> (i32, i32) {
    %c0_i32 = arith.constant 0 : i32
    %c0_i32_0 = arith.constant 0 : i32
    %c0_i32_1 = arith.constant 0 : i32
    return %c0_i32, %c0_i32_0 : i32, i32
  }
  func.func @transform_7(%arg0: i32) -> (i32, i32) {
    %c0_i32 = arith.constant 0 : i32
    %c0_i32_0 = arith.constant 0 : i32
    return %arg0, %c0_i32 : i32, i32
  }
}

</mosaic_0001>

<llo_original>
// kernel: tpu_custom_call.1
$region0: #{tpu_custom_call.1}
  #allocation0 [shape = 'u32[]', space=smem, size = 0x4, offset = 0x4, fixed_abs, tag = 'smem constant byte address 0x4 - core index']
  #allocation1 [shape = 'u32[144,128]{1,0:T(1,128)}', space=vmem, size = 0x12000, scoped, tag = 'internal scratch']
  %s0 = inlined_call_operand.vmem [shape: f32[16,4], index: 0, kind: input, shape index: {}]
  %s1 = inlined_call_operand.vmem [shape: bf16[4,128], index: 1, kind: input, shape index: {}]
  %s2 = inlined_call_operand.vmem [shape: f32[1,128], index: 2, kind: input, shape index: {}]
  %s3 = inlined_call_operand.vmem [shape: bf16[128,128], index: 3, kind: input, shape index: {}]
  %s4 = inlined_call_operand.vmem [shape: f32[1,128], index: 4, kind: input, shape index: {}]
  %s5 = inlined_call_operand.vmem [shape: bf16[128,2], index: 5, kind: input, shape index: {}]
  %s6 = inlined_call_operand.vmem [shape: f32[1,2], index: 6, kind: input, shape index: {}]
  %s7 = inlined_call_operand.vmem [shape: f32[16,2], index: 7, kind: output, shape index: {}]
  %s8 = sld [smem:[#allocation0]]
  $region38: #{tpu_custom_call.1} parent=0
    _
  %s10 = ssub.s32 1, %s8
  %s11 = scalar_select 0, %s10, %s8
  // Predicated region
  $region2: #{tpu_custom_call.1} parent=0 // pred_check
    _
  $region3: #{tpu_custom_call.1} parent=0 // pred_check_branch
    %13 = sbr.rel (0) target = $region5
  $region4: #{tpu_custom_call.1} parent=0 // pred_region
    _
  $region5: #{tpu_custom_call.1} parent=0 // pred_fallthru
    _
  // Predicated region
  $region6: #{tpu_custom_call.1} parent=0 // pred_check
    _
  $region7: #{tpu_custom_call.1} parent=0 // pred_check_branch
    %15 = sbr.rel (0) target = $region9
  $region8: #{tpu_custom_call.1} parent=0 // pred_region
    _
  $region9: #{tpu_custom_call.1} parent=0 // pred_fallthru
    _
  // Predicated region
  $region10: #{tpu_custom_call.1} parent=0 // pred_check
    _
  $region11: #{tpu_custom_call.1} parent=0 // pred_check_branch
    %17 = sbr.rel (0) target = $region13
  $region12: #{tpu_custom_call.1} parent=0 // pred_region
    _
  $region13: #{tpu_custom_call.1} parent=0 // pred_fallthru
    _
  // Predicated region
  $region14: #{tpu_custom_call.1} parent=0 // pred_check
    _
  $region15: #{tpu_custom_call.1} parent=0 // pred_check_branch
    %19 = sbr.rel (0) target = $region17
  $region16: #{tpu_custom_call.1} parent=0 // pred_region
    _
  $region17: #{tpu_custom_call.1} parent=0 // pred_fallthru
    _
  // Predicated region
  $region18: #{tpu_custom_call.1} parent=0 // pred_check
    _
  $region19: #{tpu_custom_call.1} parent=0 // pred_check_branch
    %21 = sbr.rel (0) target = $region21
  $region20: #{tpu_custom_call.1} parent=0 // pred_region
    _
  $region21: #{tpu_custom_call.1} parent=0 // pred_fallthru
    _
  // Predicated region
  $region22: #{tpu_custom_call.1} parent=0 // pred_check
    _
  $region23: #{tpu_custom_call.1} parent=0 // pred_check_branch
    %23 = sbr.rel (0) target = $region25
  $region24: #{tpu_custom_call.1} parent=0 // pred_region
    _
  $region25: #{tpu_custom_call.1} parent=0 // pred_fallthru
    _
  // Predicated region
  $region26: #{tpu_custom_call.1} parent=0 // pred_check
    _
  $region27: #{tpu_custom_call.1} parent=0 // pred_check_branch
    %25 = sbr.rel (0) target = $region29
  $region28: #{tpu_custom_call.1} parent=0 // pred_region
    _
  $region29: #{tpu_custom_call.1} parent=0 // pred_fallthru
    _
  %v27 = vld [vmem:[%s0] sm:$0xff]
  %v28 = vld [vmem:[%s0 + $0x8] sm:$0xff]
  %v29 = vpack.c.bf16 %v28, %v27
  %v30 = vld [vmem:[%s1] sm:$0x3]
  %v31 = vld [vmem:[%s2] sm:$0x1]
  %v33 = vlaneseq
  %v34 = vshrl.u32 %v33, 7
  %v35 = vsub.s32 0, %v34
  %v36 = vrot.slane %v31, %v35
  %vm38 = vcmask 31744
  %v40 = vsel %vm38, %v29, 0
  %vm42 = vcmask 1041408
  %v44 = vsel %vm42, %v30, 0
  %46 = vmatprep.subr.bf16.mxu0 0
  %47 = vmatpush1.bf16.msra.mxu0 0
  %48 = vmatprep.subr.bf16.mxu0 0
  %49 = vmatpush1.bf16.msra.mxu0 0
  %50 = vmatprep.subr.bf16.mxu0 0
  %51 = vmatpush1.bf16.msra.mxu0 0
  %52 = vmatprep.subr.bf16.mxu0 0
  %53 = vmatpush1.bf16.msra.mxu0 0
  %54 = vmatprep.subr.bf16.mxu0 0
  %55 = vmatpush1.bf16.msra.mxu0 0
  %56 = vmatprep.subr.bf16.mxu0 0
  %57 = vmatpush1.bf16.msra.mxu0 0
  %58 = vmatprep.subr.bf16.mxu0 0
  %59 = vmatpush1.bf16.msra.mxu0 0
  %60 = vmatprep.subr.bf16.mxu0 0
  %61 = vmatpush1.bf16.msra.mxu0 %v44
  %62 = vmatprep.subr.bf16.mxu0 0
  %63 = vmatpush2.bf16.msra.mxu0 0
  %64 = vmatprep.subr.bf16.mxu0 0
  %65 = vmatpush2.bf16.msra.mxu0 0
  %66 = vmatprep.subr.bf16.mxu0 0
  %67 = vmatpush2.bf16.msra.mxu0 0
  %68 = vmatprep.subr.bf16.mxu0 0
  %69 = vmatpush2.bf16.msra.mxu0 0
  %70 = vmatprep.subr.bf16.mxu0 0
  %71 = vmatpush2.bf16.msra.mxu0 0
  %72 = vmatprep.subr.bf16.mxu0 0
  %73 = vmatpush2.bf16.msra.mxu0 0
  %74 = vmatprep.subr.bf16.mxu0 0
  %75 = vmatpush2.bf16.msra.mxu0 0
  %76 = vmatprep.subr.bf16.mxu0 0
  %77 = vmatpush2.bf16.msra.mxu0 0
  %78 = vmatprep.mubr.bf16.mxu0 0
  %79 = vmatmul.mubr.bf16.gmra.mxu0 %v40
  %v80 = vpop.f32.mrf.mxu0
  %v81 = vadd.f32 %v36, %v80
  %v82 = vpop.f32.mrf.mxu0
  %v83 = vpop.f32.mrf.mxu0
  %v84 = vadd.f32 %v36, %v83
  %v85 = vpop.f32.mrf.mxu0
  %86 = vdwg.mxu0
  %v87 = vmax.f32 %v81, 0.0
  %v88 = vmax.f32 %v84, 0.0
  %v89 = vpack.c.bf16 %v88, %v87
  %v90 = vld [vmem:[%s3] sm:$0xf]
  %v91 = vld [vmem:[%s3 + $0x4] sm:$0xf]
  %v92 = vld [vmem:[%s3 + $0x8] sm:$0xf]
  %v93 = vld [vmem:[%s3 + $0xc] sm:$0xf]
  %v94 = vld [vmem:[%s3 + $0x10] sm:$0xf]
  %v95 = vld [vmem:[%s3 + $0x14] sm:$0xf]
  %v96 = vld [vmem:[%s3 + $0x18] sm:$0xf]
  %v97 = vld [vmem:[%s3 + $0x1c] sm:$0xf]
  %v98 = vld [vmem:[%s3 + $0x20] sm:$0xf]
  %v99 = vld [vmem:[%s3 + $0x24] sm:$0xf]
  %v100 = vld [vmem:[%s3 + $0x28] sm:$0xf]
  %v101 = vld [vmem:[%s3 + $0x2c] sm:$0xf]
  %v102 = vld [vmem:[%s3 + $0x30] sm:$0xf]
  %v103 = vld [vmem:[%s3 + $0x34] sm:$0xf]
  %v104 = vld [vmem:[%s3 + $0x38] sm:$0xf]
  %v105 = vld [vmem:[%s3 + $0x3c] sm:$0xf]
  %v106 = vld [vmem:[%s4] sm:$0x1]
  %v108 = vlaneseq
  %v109 = vshrl.u32 %v108, 7
  %v110 = vsub.s32 0, %v109
  %v111 = vrot.slane %v106, %v110
  %v129 = vunpack.c.l.b16 %v90
  %v130 = vunpack.c.l.b16 %v91
  %v131 = vunpack.c.l.b16 %v92
  %v132 = vunpack.c.l.b16 %v93
  %v133 = vunpack.c.l.b16 %v94
  %v134 = vunpack.c.l.b16 %v95
  %v135 = vunpack.c.l.b16 %v96
  %v136 = vunpack.c.l.b16 %v97
  %v137 = vunpack.c.l.b16 %v98
  %v138 = vunpack.c.l.b16 %v99
  %v139 = vunpack.c.l.b16 %v100
  %v140 = vunpack.c.l.b16 %v101
  %v141 = vunpack.c.l.b16 %v102
  %v142 = vunpack.c.l.b16 %v103
  %v143 = vunpack.c.l.b16 %v104
  %v144 = vunpack.c.l.b16 %v105
  %v145 = vpack.c.b16 %v130, %v129
  %v146 = vpack.c.b16 %v132, %v131
  %v147 = vpack.c.b16 %v134, %v133
  %v148 = vpack.c.b16 %v136, %v135
  %v149 = vpack.c.b16 %v138, %v137
  %v150 = vpack.c.b16 %v140, %v139
  %v151 = vpack.c.b16 %v142, %v141
  %v152 = vpack.c.b16 %v144, %v143
  %161 = vmatprep.subr.bf16.mxu0 0
  %162 = vmatpush1.bf16.msra.mxu0 %v152
  %163 = vmatprep.subr.bf16.mxu0 0
  %164 = vmatpush1.bf16.msra.mxu0 %v151
  %165 = vmatprep.subr.bf16.mxu0 0
  %166 = vmatpush1.bf16.msra.mxu0 %v150
  %167 = vmatprep.subr.bf16.mxu0 0
  %168 = vmatpush1.bf16.msra.mxu0 %v149
  %169 = vmatprep.subr.bf16.mxu0 0
  %170 = vmatpush1.bf16.msra.mxu0 %v148
  %171 = vmatprep.subr.bf16.mxu0 0
  %172 = vmatpush1.bf16.msra.mxu0 %v147
  %173 = vmatprep.subr.bf16.mxu0 0
  %174 = vmatpush1.bf16.msra.mxu0 %v146
  %175 = vmatprep.subr.bf16.mxu0 0
  %176 = vmatpush1.bf16.msra.mxu0 %v145
  %177 = vmatprep.subr.bf16.mxu0 0
  %178 = vmatpush2.bf16.msra.mxu0 0
  %179 = vmatprep.subr.bf16.mxu0 0
  %180 = vmatpush2.bf16.msra.mxu0 0
  %181 = vmatprep.subr.bf16.mxu0 0
  %182 = vmatpush2.bf16.msra.mxu0 0
  %183 = vmatprep.subr.bf16.mxu0 0
  %184 = vmatpush2.bf16.msra.mxu0 0
  %185 = vmatprep.subr.bf16.mxu0 0
  %186 = vmatpush2.bf16.msra.mxu0 0
  %187 = vmatprep.subr.bf16.mxu0 0
  %188 = vmatpush2.bf16.msra.mxu0 0
  %189 = vmatprep.subr.bf16.mxu0 0
  %190 = vmatpush2.bf16.msra.mxu0 0
  %191 = vmatprep.subr.bf16.mxu0 0
  %192 = vmatpush2.bf16.msra.mxu0 0
  %193 = vmatprep.mubr.bf16.mxu0 0
  %194 = vmatmul.mubr.bf16.gmra.mxu0 %v89
  %v195 = vpop.f32.mrf.mxu0
  %v196 = vadd.f32 %v111, %v195
  %v197 = vpop.f32.mrf.mxu0
  %v198 = vpop.f32.mrf.mxu0
  %v199 = vadd.f32 %v111, %v198
  %v200 = vpop.f32.mrf.mxu0
  %201 = vdwg.mxu0
  %v202 = vmax.f32 %v196, 0.0
  %v203 = vmax.f32 %v199, 0.0
  %v204 = vpack.c.bf16 %v203, %v202
  %v205 = vld [vmem:[%s5] sm:$0xf]
  %v206 = vld [vmem:[%s5 + $0x4] sm:$0xf]
  %v207 = vld [vmem:[%s5 + $0x8] sm:$0xf]
  %v208 = vld [vmem:[%s5 + $0xc] sm:$0xf]
  %v209 = vld [vmem:[%s5 + $0x10] sm:$0xf]
  %v210 = vld [vmem:[%s5 + $0x14] sm:$0xf]
  %v211 = vld [vmem:[%s5 + $0x18] sm:$0xf]
  %v212 = vld [vmem:[%s5 + $0x1c] sm:$0xf]
  %v213 = vld [vmem:[%s5 + $0x20] sm:$0xf]
  %v214 = vld [vmem:[%s5 + $0x24] sm:$0xf]
  %v215 = vld [vmem:[%s5 + $0x28] sm:$0xf]
  %v216 = vld [vmem:[%s5 + $0x2c] sm:$0xf]
  %v217 = vld [vmem:[%s5 + $0x30] sm:$0xf]
  %v218 = vld [vmem:[%s5 + $0x34] sm:$0xf]
  %v219 = vld [vmem:[%s5 + $0x38] sm:$0xf]
  %v220 = vld [vmem:[%s5 + $0x3c] sm:$0xf]
  %v221 = vld [vmem:[%s6] sm:$0x1]
  %v223 = vlaneseq
  %v224 = vshrl.u32 %v223, 7
  %v225 = vsub.s32 0, %v224
  %v226 = vrot.slane %v221, %v225
  %v244 = vunpack.c.l.b16 %v205
  %v245 = vunpack.c.l.b16 %v206
  %v246 = vunpack.c.l.b16 %v207
  %v247 = vunpack.c.l.b16 %v208
  %v248 = vunpack.c.l.b16 %v209
  %v249 = vunpack.c.l.b16 %v210
  %v250 = vunpack.c.l.b16 %v211
  %v251 = vunpack.c.l.b16 %v212
  %v252 = vunpack.c.l.b16 %v213
  %v253 = vunpack.c.l.b16 %v214
  %v254 = vunpack.c.l.b16 %v215
  %v255 = vunpack.c.l.b16 %v216
  %v256 = vunpack.c.l.b16 %v217
  %v257 = vunpack.c.l.b16 %v218
  %v258 = vunpack.c.l.b16 %v219
  %v259 = vunpack.c.l.b16 %v220
  %v260 = vpack.c.b16 %v245, %v244
  %v261 = vpack.c.b16 %v247, %v246
  %v262 = vpack.c.b16 %v249, %v248
  %v263 = vpack.c.b16 %v251, %v250
  %v264 = vpack.c.b16 %v253, %v252
  %v265 = vpack.c.b16 %v255, %v254
  %v266 = vpack.c.b16 %v257, %v256
  %v267 = vpack.c.b16 %v259, %v258
  %276 = vmatprep.subr.bf16.mxu0 0
  %277 = vmatpush1.bf16.msra.mxu0 %v267
  %278 = vmatprep.subr.bf16.mxu0 0
  %279 = vmatpush1.bf16.msra.mxu0 %v266
  %280 = vmatprep.subr.bf16.mxu0 0
  %281 = vmatpush1.bf16.msra.mxu0 %v265
  %282 = vmatprep.subr.bf16.mxu0 0
  %283 = vmatpush1.bf16.msra.mxu0 %v264
  %284 = vmatprep.subr.bf16.mxu0 0
  %285 = vmatpush1.bf16.msra.mxu0 %v263
  %286 = vmatprep.subr.bf16.mxu0 0
  %287 = vmatpush1.bf16.msra.mxu0 %v262
  %288 = vmatprep.subr.bf16.mxu0 0
  %289 = vmatpush1.bf16.msra.mxu0 %v261
  %290 = vmatprep.subr.bf16.mxu0 0
  %291 = vmatpush1.bf16.msra.mxu0 %v260
  %292 = vmatprep.subr.bf16.mxu0 0
  %293 = vmatpush2.bf16.msra.mxu0 0
  %294 = vmatprep.subr.bf16.mxu0 0
  %295 = vmatpush2.bf16.msra.mxu0 0
  %296 = vmatprep.subr.bf16.mxu0 0
  %297 = vmatpush2.bf16.msra.mxu0 0
  %298 = vmatprep.subr.bf16.mxu0 0
  %299 = vmatpush2.bf16.msra.mxu0 0
  %300 = vmatprep.subr.bf16.mxu0 0
  %301 = vmatpush2.bf16.msra.mxu0 0
  %302 = vmatprep.subr.bf16.mxu0 0
  %303 = vmatpush2.bf16.msra.mxu0 0
  %304 = vmatprep.subr.bf16.mxu0 0
  %305 = vmatpush2.bf16.msra.mxu0 0
  %306 = vmatprep.subr.bf16.mxu0 0
  %307 = vmatpush2.bf16.msra.mxu0 0
  %308 = vmatprep.mubr.bf16.mxu0 0
  %309 = vmatmul.mubr.bf16.gmra.mxu0 %v204
  %v310 = vpop.f32.mrf.mxu0
  %v311 = vadd.f32 %v226, %v310
  %v312 = vpop.f32.mrf.mxu0
  %v313 = vpop.f32.mrf.mxu0
  %v314 = vadd.f32 %v226, %v313
  %v315 = vpop.f32.mrf.mxu0
  %316 = vdwg.mxu0
  %vm317 = vcmask 15360
  %318 = vst.msk [vmem:[%s7] sm:$0xff] %vm317, %v311
  %319 = vst.msk [vmem:[%s7 + $0x8] sm:$0xff] %vm317, %v314
  // Predicated region
  $region30: #{tpu_custom_call.1} parent=0 // pred_check
    _
  $region31: #{tpu_custom_call.1} parent=0 // pred_check_branch
    %321 = sbr.rel (0) target = $region33
  $region32: #{tpu_custom_call.1} parent=0 // pred_region
    _
  $region33: #{tpu_custom_call.1} parent=0 // pred_fallthru
    _
  // Predicated region
  $region34: #{tpu_custom_call.1} parent=0 // pred_check
    _
  $region35: #{tpu_custom_call.1} parent=0 // pred_check_branch
    %323 = sbr.rel (0) target = $region37
  $region36: #{tpu_custom_call.1} parent=0 // pred_region
    _
  $region37: #{tpu_custom_call.1} parent=0 // pred_fallthru
    _

</llo_original>
